<compile_context>
chip_gen: v6e
topology: v6e:2x2x1
jax: 0.10.0
libtpu: 0.0.40
codegen_flags: <defaults>
</compile_context>

<pallas_src>
import jax
import jax.numpy as jnp
from jax.experimental import pallas as pl
from jax.experimental.pallas import tpu as pltpu


def _edge_weight_kernel(w_ref, msg_ref, out_ref):
    # w_ref   : (TE, 1) precomputed symmetric edge weights (message dtype)
    # msg_ref : (TE, D) message tile
    # out_ref : (TE, D) weighted messages
    out_ref[...] = msg_ref[...] * w_ref[...]   # (TE,1) broadcasts over D, one VPU pass


def _round_up(x, m):
    return (x + m - 1) // m * m


def _vmem_capacity_bytes():
    try:
        return int(pltpu.get_tpu_info().vmem_capacity_bytes)
    except Exception:
        return 64 * 1024 * 1024   # conservative (v7x-sized) fallback


def edge_weighting(source, target, message, *, num_nodes=None, donate_message=False):
    """Symmetric (inverse-frequency) edge weighting of messages.

    source, target: (E,) integer node indices per edge.
    message:        (E, D) float messages.
    num_nodes:      static node count for bincount.  If None, it is derived on
                    the host (forces a device sync; pass it when jitting).
    donate_message: alias the output onto `message`'s HBM buffer.
    returns:        (E, D) messages scaled by rsqrt(deg_src * deg_tgt).
    """
    E, D = message.shape
    assert source.shape == (E,) and target.shape == (E,)

    src = source.astype(jnp.int32)
    tgt = target.astype(jnp.int32)
    if num_nodes is None:
        # TODO(synk): host-only branch; forces device->host sync and cannot be jitted.
        num_nodes = int(jax.device_get(jnp.maximum(jnp.max(src), jnp.max(tgt)))) + 1

    # --- Precompute per-edge symmetric weights in cheap XLA (O(E + N)) -------
    cnt_s = jnp.bincount(src, length=num_nodes).astype(jnp.float32)   # (N,)
    cnt_t = jnp.bincount(tgt, length=num_nodes).astype(jnp.float32)   # (N,)
    w = jax.lax.rsqrt(cnt_s[src] * cnt_t[tgt])                        # (E,) f32
    w_col = w.astype(message.dtype).reshape(E, 1)                     # native dtype column

    # --- Tile sizing ----------------------------------------------------------
    itemsize = jnp.dtype(message.dtype).itemsize
    sub = {4: 8, 2: 16, 1: 32}.get(itemsize, 8)       # sublane packing per dtype
    D_lanes = _round_up(D, 128)                       # lane-padded VMEM footprint per row

    vmem_cap = _vmem_capacity_bytes()
    vmem_budget = min(vmem_cap // 3, 48 * 1024 * 1024)

    # Per-row VMEM bytes per pipeline step, double-buffered:
    #   msg + out tiles (D_lanes each) + weight tile (lane-padded to 128).
    bytes_per_row_step = 2 * (2 * D_lanes * itemsize + 128 * itemsize)
    max_rows = max(sub, (vmem_budget // bytes_per_row_step) // sub * sub)

    # Target ~4 MiB of message per buffer: long DMAs amortize the fixed
    # per-grid-step overhead and get close to the HBM roofline.
    target_tile_bytes = 4 * 1024 * 1024
    te = max(sub, (target_tile_bytes // (D_lanes * itemsize)) // sub * sub)

    # v7x megacore guard: keep >= 4 grid steps (when E allows) so both
    # TensorCores get work under dimension_semantics=("parallel",).
    te_parallel_cap = max(sub, _round_up(pl.cdiv(E, 4), sub))

    te = min(te, max_rows, te_parallel_cap, _round_up(E, sub))
    te = max(sub, (te // sub) * sub)

    grid = (pl.cdiv(E, te),)

    call_kwargs = {}
    if donate_message:
        call_kwargs["input_output_aliases"] = {1: 0}   # message -> output

    out = pl.pallas_call(
        _edge_weight_kernel,
        out_shape=jax.ShapeDtypeStruct((E, D), message.dtype),
        grid_spec=pltpu.PrefetchScalarGridSpec(
            num_scalar_prefetch=0,
            grid=grid,
            in_specs=[
                pl.BlockSpec((te, 1), lambda i: (i, 0)),   # weight column tile
                pl.BlockSpec((te, D), lambda i: (i, 0)),   # message tile (full D)
            ],
            out_specs=pl.BlockSpec((te, D), lambda i: (i, 0)),
        ),
        compiler_params=pltpu.CompilerParams(
            dimension_semantics=("parallel",),             # shards edges across TCs on v7x
            vmem_limit_bytes=min(vmem_cap // 2, 64 * 1024 * 1024),
        ),
        **call_kwargs,
    )(w_col, message)

    return out


def edge_weighting_ref(source, target, message):
    """Pure-JAX reference of the same semantics."""
    def inv_freq(idx):
        cnt = jnp.sum(idx[:, None] == idx[None, :], axis=1).astype(jnp.float32)
        return 1.0 / cnt
    w = jnp.sqrt(inv_freq(source) * inv_freq(target))
    return (message * w[:, None]).astype(message.dtype)


if __name__ == "__main__":
    key = jax.random.PRNGKey(0)
    k1, k2, k3 = jax.random.split(key, 3)

    num_nodes, num_edges, dim = 16, 64, 128
    source = jax.random.randint(k1, (num_edges,), 0, num_nodes, dtype=jnp.int32)
    target = jax.random.randint(k2, (num_edges,), 0, num_nodes, dtype=jnp.int32)
    message = jax.random.normal(k3, (num_edges, dim), dtype=jnp.float32)

    out = edge_weighting(source, target, message, num_nodes=num_nodes)
    out = jax.block_until_ready(out)

    ref = edge_weighting_ref(source, target, message)
    assert out.shape == (num_edges, dim)
    assert out.dtype == message.dtype
    assert jnp.allclose(out, ref, atol=1e-5, rtol=1e-5), "mismatch vs JAX reference"

    print("KERNEL_OK")
</pallas_src>

<mosaic_0001>
module attributes {stable_mosaic.version = 11 : i64} {
  func.func @_edge_weight_kernel(%arg0: i32, %arg1: memref<16x1xf32, #tpu.memory_space<vmem>>, %arg2: memref<16x128xf32, #tpu.memory_space<vmem>>, %arg3: memref<16x128xf32, #tpu.memory_space<vmem>>) attributes {dimension_semantics = [#tpu.dimension_semantics<parallel>], iteration_bounds = array<i64: 4>, scalar_prefetch = 0 : i64, scratch_operands = 0 : i64, tpu.core_type = #tpu.core_type<tc>, window_params = [{transform_indices = @transform_0, window_bounds = array<i64: 16, 1>}, {transform_indices = @transform_1, window_bounds = array<i64: 16, 128>}, {transform_indices = @transform_2, window_bounds = array<i64: 16, 128>}]} {
    %c0 = arith.constant 0 : index
    %c0_0 = arith.constant 0 : index
    %0 = vector.load %arg2[%c0, %c0_0] : memref<16x128xf32, #tpu.memory_space<vmem>>, vector<16x128xf32>
    %c0_1 = arith.constant 0 : index
    %c0_2 = arith.constant 0 : index
    %1 = vector.load %arg1[%c0_1, %c0_2] : memref<16x1xf32, #tpu.memory_space<vmem>>, vector<16x1xf32>
    %2 = vector.broadcast %1 : vector<16x1xf32> to vector<16x128xf32>
    %3 = arith.mulf %0, %2 : vector<16x128xf32>
    %c0_3 = arith.constant 0 : index
    %c0_4 = arith.constant 0 : index
    %4 = vector.load %arg3[%c0_3, %c0_4] : memref<16x128xf32, #tpu.memory_space<vmem>>, vector<16x128xf32>
    tpu.vector_store %arg3[%c0_3, %c0_4], %3 {strides = array<i32>} : memref<16x128xf32, #tpu.memory_space<vmem>>, vector<16x128xf32>,
    return
  }
  func.func @transform_0(%arg0: i32) -> (i32, i32) {
    %c0_i32 = arith.constant 0 : i32
    %c0_i32_0 = arith.constant 0 : i32
    return %arg0, %c0_i32 : i32, i32
  }
  func.func @transform_1(%arg0: i32) -> (i32, i32) {
    %c0_i32 = arith.constant 0 : i32
    %c0_i32_0 = arith.constant 0 : i32
    return %arg0, %c0_i32 : i32, i32
  }
  func.func @transform_2(%arg0: i32) -> (i32, i32) {
    %c0_i32 = arith.constant 0 : i32
    %c0_i32_0 = arith.constant 0 : i32
    return %arg0, %c0_i32 : i32, i32
  }
}

</mosaic_0001>

<llo_original>
// kernel: tpu_custom_call.1
$region0: #{tpu_custom_call.1}
  #allocation0 [shape = 'u32[]', space=smem, size = 0x4, offset = 0x4, fixed_abs, tag = 'smem constant byte address 0x4 - core index']
  #allocation1 [shape = 'u32[144,128]{1,0:T(1,128)}', space=vmem, size = 0x12000, scoped, tag = 'internal scratch']
  %s0 = inlined_call_operand.vmem [shape: f32[64,1], index: 0, kind: input, shape index: {}]
  %s1 = inlined_call_operand.vmem [shape: f32[64,128], index: 1, kind: input, shape index: {}]
  %s2 = inlined_call_operand.hbm [shape: f32[64,128], index: 2, kind: output, shape index: {}]
  %s3 = sld [smem:[#allocation0]]
  $region41: #{tpu_custom_call.1} parent=0
    _
  %s5 = ssub.s32 1, %s3
  %s6 = scalar_select 0, %s5, %s3
  $region1: #{tpu_custom_call.1} parent=0
    #allocation2 [shape = 'u8[16384]{0}', space=vmem, size = 0x4000, scoped, tag = 'output window, operand 0']
    #allocation3 [shape = 's32[2]{0}', space=sflag, size = 0x8, scoped, tag = 'scoped memory for tpu_custom_call.1']
    %7 = vsyncpa [#allocation3], 0
    %s8 = scalar_lea.sflag [#allocation3], 1
    %9 = vsyncpa %s8, 0
    loop: start=0, step=1, limit=6
    $region2: #{tpu_custom_call.1} parent=1 // loop_pre_header
      _
    $region3: #{tpu_custom_call.1} parent=1 // loop_header
      %s11 = sphi 0, %s15
      %p12 = scmp.ge.s32.totalorder %s11, 6
      %s21 = sphi 0, %s23
      %s24 = sphi 0, %s21
      %s25 = sphi 0, %s24
      %s41 = sphi 0, %s25
      %s47 = sphi 0, %s49
      %s50 = sphi 0, %s47
      %s51 = sphi 0, %s50
      %s67 = sphi 0, %s51
      %s73 = sphi 0, %s75
      %s76 = sphi 0, %s73
      %s77 = sphi 0, %s76
      %s93 = sphi 0, %s77
    $region4: #{tpu_custom_call.1} parent=1 // loop_header_branch
      %14 = sbr.rel (%p12) target = $region8
    $region5: #{tpu_custom_call.1} parent=1 // loop_body
      %s16 = ssub.s32 %s11, 1
      %s17 = ssub.s32 %s11, 2
      %s18 = sadd.s32 %s11, 1
      %s19 = ssub.s32 %s11, %s18
      %p20 = scmp.eq.s32.totalorder %s19, 0
      %s22 = sadd.s32 %s21, 1
      %s23 = scalar_select %p20, %s21, %s22
      %p26 = pneg %p20
      %p27 = scmp.eq.s32.totalorder %s11, 3
      %p28 = por %p26, %p27
      %p29 = scmp.ne.s32.totalorder %s21, %s24
      %p30 = scmp.eq.s32.totalorder %s11, 0
      %p31 = por %p29, %p30
      %p32 = scmp.ne.s32.totalorder %s21, %s24
      %p33 = scmp.eq.s32.totalorder %s16, 3
      %p34 = por %p32, %p33
      %p35 = scmp.ne.s32.totalorder %s24, %s25
      %p36 = scmp.eq.s32.totalorder %s16, 0
      %p37 = por %p35, %p36
      %p38 = scmp.ne.s32.totalorder %s24, %s25
      %p39 = scmp.eq.s32.totalorder %s17, 3
      %p40 = por %p38, %p39
      %p42 = scmp.ne.s32.totalorder %s25, %s41
      %p43 = scmp.eq.s32.totalorder %s17, 0
      %p44 = por %p42, %p43
      %s45 = ssub.s32 %s11, %s18
      %p46 = scmp.eq.s32.totalorder %s45, 0
      %s48 = sadd.s32 %s47, 1
      %s49 = scalar_select %p46, %s47, %s48
      %p52 = pneg %p46
      %p53 = scmp.eq.s32.totalorder %s11, 3
      %p54 = por %p52, %p53
      %p55 = scmp.ne.s32.totalorder %s47, %s50
      %p56 = scmp.eq.s32.totalorder %s11, 0
      %p57 = por %p55, %p56
      %p58 = scmp.ne.s32.totalorder %s47, %s50
      %p59 = scmp.eq.s32.totalorder %s16, 3
      %p60 = por %p58, %p59
      %p61 = scmp.ne.s32.totalorder %s50, %s51
      %p62 = scmp.eq.s32.totalorder %s16, 0
      %p63 = por %p61, %p62
      %p64 = scmp.ne.s32.totalorder %s50, %s51
      %p65 = scmp.eq.s32.totalorder %s17, 3
      %p66 = por %p64, %p65
      %p68 = scmp.ne.s32.totalorder %s51, %s67
      %p69 = scmp.eq.s32.totalorder %s17, 0
      %p70 = por %p68, %p69
      %s71 = ssub.s32 %s11, %s18
      %p72 = scmp.eq.s32.totalorder %s71, 0
      %s74 = sadd.s32 %s73, 1
      %s75 = scalar_select %p72, %s73, %s74
      %p78 = pneg %p72
      %p79 = scmp.eq.s32.totalorder %s11, 3
      %p80 = por %p78, %p79
      %p81 = scmp.ne.s32.totalorder %s73, %s76
      %p82 = scmp.eq.s32.totalorder %s11, 0
      %p83 = por %p81, %p82
      %p84 = scmp.ne.s32.totalorder %s73, %s76
      %p85 = scmp.eq.s32.totalorder %s16, 3
      %p86 = por %p84, %p85
      %p87 = scmp.ne.s32.totalorder %s76, %s77
      %p88 = scmp.eq.s32.totalorder %s16, 0
      %p89 = por %p87, %p88
      %p90 = scmp.ne.s32.totalorder %s76, %s77
      %p91 = scmp.eq.s32.totalorder %s17, 3
      %p92 = por %p90, %p91
      %p94 = scmp.ne.s32.totalorder %s77, %s93
      %p95 = scmp.eq.s32.totalorder %s17, 0
      %p96 = por %p94, %p95
      %p97 = scmp.le.s32.totalorder 1, %s11
      %p98 = scmp.lt.s32.totalorder %s11, 5
      %p99 = pnand %p97, %p98
      %p100 = pneg %p99
      // Predicated region
      $region9: #{tpu_custom_call.1} parent=5 // pred_check
        _
      $region10: #{tpu_custom_call.1} parent=5 // pred_check_branch
        %102 = sbr.rel (%p99) target = $region12
      $region11: #{tpu_custom_call.1} parent=5 // pred_region
        %s103 = ssub.s32 %s11, 1
      $region12: #{tpu_custom_call.1} parent=5 // pred_fallthru
        _
      %p104 = scmp.lt.s32.totalorder %s11, 4
      // Predicated region
      $region13: #{tpu_custom_call.1} parent=5 // pred_check
        %p105 = pneg %p104
      $region14: #{tpu_custom_call.1} parent=5 // pred_check_branch
        %107 = sbr.rel (%p105) target = $region16
      $region15: #{tpu_custom_call.1} parent=5 // pred_region
        // Predicated region
        $region17: #{tpu_custom_call.1} parent=15 // pred_check
          %p108 = pneg %p31
        $region18: #{tpu_custom_call.1} parent=15 // pred_check_branch
          %110 = sbr.rel (%p108) target = $region20
        $region19: #{tpu_custom_call.1} parent=15 // pred_region
          %s111 = smul.u32 2, %s11
          %p112 = scmp.lt.s32.totalorder %s111, 7
          %s113 = scalar_select %p112, %s111, 7
          %s114 = smul.addr %s113, 8
          %s115 = scalar_lea.vmem %s0, %s114
          %s116 = smul.u32 2, %s11
        $region20: #{tpu_custom_call.1} parent=15 // pred_fallthru
          _
        // Predicated region
        $region21: #{tpu_custom_call.1} parent=15 // pred_check
          %p117 = pneg %p57
        $region22: #{tpu_custom_call.1} parent=15 // pred_check_branch
          %119 = sbr.rel (%p117) target = $region24
        $region23: #{tpu_custom_call.1} parent=15 // pred_region
          %s120 = smul.u32 2, %s11
          %p121 = scmp.lt.s32.totalorder %s120, 7
          %s122 = scalar_select %p121, %s120, 7
          %s123 = smul.addr %s122, 8
          %s124 = scalar_lea.vmem %s1, %s123
          %s125 = smul.u32 2, %s11
        $region24: #{tpu_custom_call.1} parent=15 // pred_fallthru
          _
      $region16: #{tpu_custom_call.1} parent=5 // pred_fallthru
        _
      %p126 = scmp.le.s32.totalorder 1, %s11
      %p127 = scmp.lt.s32.totalorder %s11, 5
      %p128 = pnand %p126, %p127
      %p129 = pneg %p128
      // Predicated region
      $region25: #{tpu_custom_call.1} parent=5 // pred_check
        _
      $region26: #{tpu_custom_call.1} parent=5 // pred_check_branch
        %131 = sbr.rel (%p128) target = $region28
      $region27: #{tpu_custom_call.1} parent=5 // pred_region
        %s132 = ssub.s32 %s11, 1
        %s133 = smul.u32 2, %s16
        %p134 = scmp.lt.s32.totalorder %s133, 7
        %s135 = scalar_select %p134, %s133, 7
        %s136 = smul.addr %s135, 8
        %s137 = scalar_lea.vmem %s0, %s136
        %p138 = pneg %p37
        %p139 = pneg %p34
        %s140 = smul.u32 2, %s16
        %p141 = scmp.lt.s32.totalorder %s140, 7
        %s142 = scalar_select %p141, %s140, 7
        %s143 = smul.addr %s142, 8
        %s144 = scalar_lea.vmem %s1, %s143
        %p145 = pneg %p63
        %p146 = pneg %p60
        %p147 = pneg %p89
        %p148 = pneg %p86
        %s149 = sand.u32 %s76, 1
        %s150 = scalar_lea.sflag [#allocation3], %s149
        %s151 = sand.u32 %s76, 1
        %s152 = smul.addr %s151, 16
        %s153 = scalar_lea.vmem [#allocation2], %s152
        %s154 = smul.u32 2, %s16
        %p155 = scmp.lt.s32.totalorder %s154, 7
        %s156 = scalar_select %p155, %s154, 7
        %s157 = smul.addr %s156, 8
        %s158 = scalar_lea.vmem %s0, %s157
        %s159 = smul.u32 2, %s16
        %s160 = smul.u32 2, %s16
        %p161 = scmp.lt.s32.totalorder %s160, 7
        %s162 = scalar_select %p161, %s160, 7
        %s163 = smul.addr %s162, 8
        %s164 = scalar_lea.vmem %s1, %s163
        %s165 = smul.u32 2, %s16
        %s166 = smul.u32 2, %s16
        %v167 = vld [vmem:[%s164] sm:$0xff]
        %v168 = vld [vmem:[%s164 + $0x8] sm:$0xff]
        %v169 = vld [vmem:[%s158] sm:$0xff]
        %v170 = vld [vmem:[%s158 + $0x8] sm:$0xff]
        %172 = vset.pattern.permute.xlu0 0
        %173 = vperm.xlu0 %172, %v169
        %v174 = vpop.permute.xlu0 %173
        %177 = vset.pattern.permute.xlu0 0
        %178 = vperm.xlu0 %177, %v170
        %v179 = vpop.permute.xlu0 %178
        %v181 = vmul.f32 %v167, %v174
        %v182 = vmul.f32 %v168, %v179
        %183 = vst [vmem:[%s153] sm:$0xff] %v181
        %184 = vst [vmem:[%s153 + $0x8] sm:$0xff] %v182
        %s185 = sand.u32 %s76, 1
        %s186 = scalar_lea.sflag [#allocation3], %s185
        %s187 = sand.u32 %s76, 1
        %s188 = smul.addr %s187, 16
        %s189 = scalar_lea.vmem [#allocation2], %s188
        // Predicated region
        $region29: #{tpu_custom_call.1} parent=27 // pred_check
          %p190 = pneg %p86
        $region30: #{tpu_custom_call.1} parent=27 // pred_check_branch
          %192 = sbr.rel (%p190) target = $region32
        $region31: #{tpu_custom_call.1} parent=27 // pred_region
          %s193 = smul.u32 2, %s16
          %s195 = ssub.s32 256, 256
          %196 = vsyncadd %s186, %s195
          %s197 = smul.addr %s193, 128
          %s198 = scalar_lea.hbm %s2, %s197
          %s199 = sshll.u32 %s189, 4
          %s200 = int_to_ptr.vmem [resolvable:$true] %s199
          %205 = dma.vmem_to_hbm [thread:$0]  %s200, 256, %s198, %s186, 128, 128, 8
        $region32: #{tpu_custom_call.1} parent=27 // pred_fallthru
          _
      $region28: #{tpu_custom_call.1} parent=5 // pred_fallthru
        _
      %p206 = scmp.le.s32.totalorder 2, %s11
      // Predicated region
      $region33: #{tpu_custom_call.1} parent=5 // pred_check
        %p207 = pneg %p206
      $region34: #{tpu_custom_call.1} parent=5 // pred_check_branch
        %209 = sbr.rel (%p207) target = $region36
      $region35: #{tpu_custom_call.1} parent=5 // pred_region
        %s210 = ssub.s32 %s11, 2
        // Predicated region
        $region37: #{tpu_custom_call.1} parent=35 // pred_check
          %p211 = pneg %p92
        $region38: #{tpu_custom_call.1} parent=35 // pred_check_branch
          %213 = sbr.rel (%p211) target = $region40
        $region39: #{tpu_custom_call.1} parent=35 // pred_region
          %s214 = sand.u32 %s77, 1
          %s215 = scalar_lea.sflag [#allocation3], %s214
          %s216 = sand.u32 %s77, 1
          %s217 = smul.addr %s216, 16
          %s218 = scalar_lea.vmem [#allocation2], %s217
          %219 = dma.done %s215, 256
        $region40: #{tpu_custom_call.1} parent=35 // pred_fallthru
          _
      $region36: #{tpu_custom_call.1} parent=5 // pred_fallthru
        _
    $region6: #{tpu_custom_call.1} parent=1 // loop_footer
      %s15 = sadd.s32 1, %s11
    $region7: #{tpu_custom_call.1} parent=1 // loop_footer_branch
      %10 = sbr.rel target = $region3
    $region8: #{tpu_custom_call.1} parent=1 // loop_exit
      _
    %220 = vsyncpa [#allocation3], 1
    %s221 = scalar_lea.sflag [#allocation3], 1
    %222 = vsyncpa %s221, 1

</llo_original>
